<compile_context>
chip_gen: v7x
topology: tpu7x:2x2x1
jax: 0.10.0
libtpu: 0.0.40
codegen_flags: <defaults>
</compile_context>

<pallas_src>
import functools

import jax
import jax.numpy as jnp
from jax.experimental import pallas as pl
from jax.experimental.pallas import tpu as pltpu


def _round_up(x, m):
    return ((x + m - 1) // m) * m


# ---------------------------------------------------------------------------
# Pallas kernel: grouped SwiGLU expert MLP.
# Every row-tile of the (expert-sorted, tile-padded) token matrix belongs to
# exactly one expert; the expert id is looked up from the scalar-prefetch table
# inside the weight BlockSpec index_maps (not inside the body).
# ---------------------------------------------------------------------------
def grouped_swiglu_kernel(eid_ref, x_ref, gate_ref, wg_ref, wu_ref, wd_ref, out_ref):
    """out = gate * ((silu(x @ Wg) * (x @ Wu)) @ Wd) for one row-tile.

    Grid = (row_tile [parallel], i_tile [arbitrary accumulation, innermost]).
      x_ref    : (TILE_T, H_pad)   compute dtype (bf16 / f32)
      gate_ref : (TILE_T, 1)       f32 per-row gate weight (0 for padding rows)
      wg_ref   : (H_pad, TILE_I)   compute dtype (expert axis squeezed)
      wu_ref   : (H_pad, TILE_I)
      wd_ref   : (TILE_I, H_pad)
      out_ref  : (TILE_T, H_pad)   f32, resident across the i axis (accumulator)
    """
    del eid_ref  # only consumed by the BlockSpec index_maps
    i = pl.program_id(1)

    @pl.when(i == 0)
    def _():
        out_ref[...] = jnp.zeros_like(out_ref)

    x = x_ref[...]
    g = jnp.dot(x, wg_ref[...], preferred_element_type=jnp.float32)   # (TILE_T, TILE_I)
    u = jnp.dot(x, wu_ref[...], preferred_element_type=jnp.float32)   # (TILE_T, TILE_I)
    h = (g * jax.nn.sigmoid(g)) * u                                    # SwiGLU, f32 elementwise
    out_ref[...] += jnp.dot(h.astype(wd_ref.dtype), wd_ref[...],
                            preferred_element_type=jnp.float32)        # (TILE_T, H_pad)

    @pl.when(i == pl.num_programs(1) - 1)
    def _():
        out_ref[...] *= gate_ref[...]   # gate-weight the finished row-tile


def _vmem_limit_bytes(tile_t, h_pad, tile_i, in_bytes):
    """Rough double-buffered VMEM estimate, clamped to a v7x-safe scoped budget."""
    x_b = tile_t * h_pad * in_bytes
    g_b = tile_t * 4
    w_b = (2 * h_pad * tile_i + tile_i * h_pad) * in_bytes
    out_b = tile_t * h_pad * 4
    inter_b = 3 * tile_t * tile_i * 4          # g, u, h f32 intermediates
    est = 2 * (x_b + g_b + w_b) + 2 * out_b + inter_b
    return int(min(max(2 * est, 32 * 1024 * 1024), 48 * 1024 * 1024))


def grouped_moe_experts(tile_eid, x_grp, gate_grp, w_gate_e, w_up_e, w_down_e,
                        *, tile_t, tile_i):
    """Runs the grouped SwiGLU kernel over the expert-sorted row tiles."""
    P, H_pad = x_grp.shape
    I_pad = w_gate_e.shape[2]
    num_t = P // tile_t
    num_i = I_pad // tile_i

    return pl.pallas_call(
        grouped_swiglu_kernel,
        out_shape=jax.ShapeDtypeStruct((P, H_pad), jnp.float32),
        grid_spec=pltpu.PrefetchScalarGridSpec(
            num_scalar_prefetch=1,             # tile_eid -> SMEM, visible to index_maps
            grid=(num_t, num_i),
            in_specs=[
                pl.BlockSpec((tile_t, H_pad), lambda t, i, eid: (t, 0)),
                pl.BlockSpec((tile_t, 1), lambda t, i, eid: (t, 0)),
                # Weight tiles of the expert owning row-tile t (expert dim squeezed).
                # Perf knob: pipeline_mode=pl.Buffered(3) once per-generation VMEM
                # headroom is verified.
                pl.BlockSpec((pl.Squeezed(), H_pad, tile_i),
                             lambda t, i, eid: (eid[t], 0, i)),
                pl.BlockSpec((pl.Squeezed(), H_pad, tile_i),
                             lambda t, i, eid: (eid[t], 0, i)),
                pl.BlockSpec((pl.Squeezed(), tile_i, H_pad),
                             lambda t, i, eid: (eid[t], i, 0)),
            ],
            out_specs=pl.BlockSpec((tile_t, H_pad), lambda t, i, eid: (t, 0)),
        ),
        compiler_params=pltpu.CompilerParams(
            dimension_semantics=("parallel", "arbitrary"),
            vmem_limit_bytes=_vmem_limit_bytes(tile_t, H_pad, tile_i,
                                               x_grp.dtype.itemsize),
        ),
    )(tile_eid, x_grp, gate_grp, w_gate_e, w_up_e, w_down_e)


# ---------------------------------------------------------------------------
# Full MoE forward: gating + routing in XLA, grouped expert GEMMs in Pallas.
# ---------------------------------------------------------------------------
@functools.partial(jax.jit, static_argnames=("topk", "tile_t", "tile_i", "compute_dtype"))
def moe_forward(x, params, topk, *, tile_t=128, tile_i=512,
                compute_dtype=jnp.bfloat16):
    """x: (B, S, H) f32 -> (final_outputs (B, S, H) f32, gate_logit (B*S, E) f32)."""
    B, S, H = x.shape
    E = params["gate_w"].shape[1]
    I = params["w_gate_e"].shape[2]
    T = B * S
    x_flat = x.reshape(T, H)

    # ---- Gating (plain XLA: tiny (H,E) matmul, fuses with top-k / softmax) ----
    logits = x_flat @ params["gate_w"] + params["gate_b"]           # (T, E) f32
    topk_vals, topk_idx = jax.lax.top_k(logits, topk)               # (T, k)
    # softmax over sparse (-inf off top-k) logits == softmax over the top-k values
    gate_vals = jax.nn.softmax(topk_vals, axis=-1)                  # (T, k) f32

    # ---- Routing (XLA): sort (token, slot) pairs by expert, pad groups to tiles ----
    Tk = T * topk
    flat_expert = topk_idx.reshape(-1).astype(jnp.int32)            # (Tk,)
    flat_token = jnp.repeat(jnp.arange(T, dtype=jnp.int32), topk)   # (Tk,)
    flat_gate = gate_vals.reshape(-1)                               # (Tk,)

    order = jnp.argsort(flat_expert)
    sorted_expert = flat_expert[order]
    sorted_token = flat_token[order]
    sorted_gate = flat_gate[order]

    counts = jnp.bincount(flat_expert, length=E).astype(jnp.int32)          # (E,)
    padded_counts = ((counts + tile_t - 1) // tile_t) * tile_t              # (E,)
    raw_starts = jnp.concatenate(
        [jnp.zeros((1,), jnp.int32), jnp.cumsum(counts)[:-1].astype(jnp.int32)])
    pad_starts = jnp.concatenate(
        [jnp.zeros((1,), jnp.int32), jnp.cumsum(padded_counts)[:-1].astype(jnp.int32)])

    pos_in_group = jnp.arange(Tk, dtype=jnp.int32) - raw_starts[sorted_expert]
    dest = pad_starts[sorted_expert] + pos_in_group                 # unique, < P

    # Static capacity: each expert group wastes at most (tile_t - 1) padding rows.
    num_tiles = (Tk + E * (tile_t - 1) + tile_t - 1) // tile_t
    P = num_tiles * tile_t

    # Per-row-tile expert id (scalar-prefetch table for the weight index_maps).
    tile_start = jnp.arange(num_tiles, dtype=jnp.int32) * tile_t
    group_end = pad_starts + padded_counts                          # (E,)
    tile_eid = jnp.sum(tile_start[:, None] >= group_end[None, :], axis=1)
    tile_eid = jnp.minimum(tile_eid, E - 1).astype(jnp.int32)       # clamp unused tail tiles

    # ---- Pad H / I to lane-dense (multiple-of-128) MXU shapes; cast MXU inputs ----
    # (In production the expert weights would be stored pre-padded / pre-cast once.)
    H_pad = _round_up(H, 128)
    I_pad = _round_up(I, 128)
    tile_i_eff = tile_i if (tile_i <= I_pad and I_pad % tile_i == 0) else I_pad

    xp = jnp.pad(x_flat, ((0, 0), (0, H_pad - H))).astype(compute_dtype)
    wg = jnp.pad(params["w_gate_e"],
                 ((0, 0), (0, H_pad - H), (0, I_pad - I))).astype(compute_dtype)
    wu = jnp.pad(params["w_up_e"],
                 ((0, 0), (0, H_pad - H), (0, I_pad - I))).astype(compute_dtype)
    wd = jnp.pad(params["w_down_e"],
                 ((0, 0), (0, I_pad - I), (0, H_pad - H))).astype(compute_dtype)

    # Expert-grouped, tile-padded inputs (padding rows keep x = 0 and gate = 0).
    x_grp = jnp.zeros((P, H_pad), compute_dtype).at[dest].set(xp[sorted_token])
    gate_grp = jnp.zeros((P, 1), jnp.float32).at[dest].set(sorted_gate[:, None])
    token_grp = jnp.zeros((P,), jnp.int32).at[dest].set(sorted_token)

    # ---- Pallas grouped expert GEMMs (rows come back already gate-weighted) ----
    y_grp = grouped_moe_experts(tile_eid, x_grp, gate_grp, wg, wu, wd,
                                tile_t=tile_t, tile_i=tile_i_eff)   # (P, H_pad) f32

    # ---- Un-route: scatter-add expert outputs back to their tokens (XLA) ----
    # Padding rows have gate 0 -> contribute exact zeros to token 0.
    out_flat = jnp.zeros((T, H_pad), jnp.float32).at[token_grp].add(y_grp)
    out = out_flat[:, :H].astype(x.dtype).reshape(B, S, H)
    return out, logits


# ---------------------------------------------------------------------------
# Pure-JAX f32 reference (mirrors the PyTorch masked gather/scatter semantics).
# ---------------------------------------------------------------------------
def moe_reference(x, params, topk):
    B, S, H = x.shape
    E = params["gate_w"].shape[1]
    x_flat = x.reshape(-1, H)
    logits = x_flat @ params["gate_w"] + params["gate_b"]
    _, topk_idx = jax.lax.top_k(logits, topk)
    sel = jnp.any(jax.nn.one_hot(topk_idx, E, dtype=jnp.bool_), axis=-2)
    gate_w = jax.nn.softmax(jnp.where(sel, logits, -jnp.inf), axis=-1)
    out = jnp.zeros_like(x_flat)
    for e in range(E):
        g = x_flat @ params["w_gate_e"][e]
        u = x_flat @ params["w_up_e"][e]
        d = (g * jax.nn.sigmoid(g) * u) @ params["w_down_e"][e]
        out = out + d * gate_w[:, e:e + 1]
    return out.reshape(B, S, H), logits


# ---------------------------------------------------------------------------
if __name__ == "__main__":
    # Small config consistent with the module:
    #   hidden_size=32, intermediate_size=64, expert_num=4, topk=2, mlp_bias=False
    B, S, H, I, E, TOPK = 2, 8, 32, 64, 4, 2

    key = jax.random.PRNGKey(0)
    keys = jax.random.split(key, 6)

    params = {
        # Gating nn.Linear(H, E): weight stored transposed as (H, E), bias (E,).
        "gate_w": jax.random.normal(keys[0], (H, E), jnp.float32) / jnp.sqrt(H),
        "gate_b": jax.random.normal(keys[1], (E,), jnp.float32) * 0.01,
        # Experts (mlp_bias=False): stacked weights, already transposed for x @ W.
        "w_gate_e": jax.random.normal(keys[2], (E, H, I), jnp.float32) / jnp.sqrt(H),
        "w_up_e":   jax.random.normal(keys[3], (E, H, I), jnp.float32) / jnp.sqrt(H),
        "w_down_e": jax.random.normal(keys[4], (E, I, H), jnp.float32) / jnp.sqrt(I),
    }

    x = jax.random.normal(keys[5], (B, S, H), jnp.float32)

    # Production path: bf16 MXU inputs, f32 accumulation.
    out_bf16, gate_logit = moe_forward(x, params, TOPK)
    out_bf16 = jax.block_until_ready(out_bf16)
    gate_logit = jax.block_until_ready(gate_logit)

    # f32 compute path for a tight check of the routing / kernel plumbing.
    out_f32, _ = moe_forward(x, params, TOPK, compute_dtype=jnp.float32)
    out_f32 = jax.block_until_ready(out_f32)

    ref_out, ref_logit = moe_reference(x, params, TOPK)

    assert out_bf16.shape == (B, S, H)
    assert gate_logit.shape == (B * S, E)
    assert jnp.allclose(gate_logit, ref_logit, rtol=1e-5, atol=1e-5)
    assert jnp.allclose(out_f32, ref_out, rtol=2e-4, atol=2e-4)
    # bf16 MXU inputs -> loosened tolerance, per review guidance.
    assert jnp.allclose(out_bf16, ref_out, rtol=5e-2, atol=5e-2)

    print("KERNEL_OK")
</pallas_src>

<mosaic_0001>
module attributes {stable_mosaic.version = 11 : i64} {
  func.func private @main(%arg0: i32) attributes {dimension_semantics = [#tpu.dimension_semantics<core_parallel>], iteration_bounds = array<i64: 2>, tpu.core_type = #tpu.core_type<sc_scalar_subcore>, window_params = []} {
    return
  }
}

module attributes {stable_mosaic.version = 11 : i64} {
  func.func private @main(%arg0: i32) attributes {dimension_semantics = [#tpu.dimension_semantics<core_parallel>], iteration_bounds = array<i64: 2>, tpu.core_type = #tpu.core_type<sc_scalar_subcore>, window_params = []} {
    return
  }
}

module attributes {stable_mosaic.version = 11 : i64} {
  func.func @grouped_swiglu_kernel(%arg0: i32, %arg1: i32, %arg2: memref<5xi32, #tpu.memory_space<smem>>, %arg3: memref<128x128xbf16, #tpu.memory_space<vmem>>, %arg4: memref<128x1xf32, #tpu.memory_space<vmem>>, %arg5: memref<1x128x128xbf16, #tpu.memory_space<vmem>>, %arg6: memref<1x128x128xbf16, #tpu.memory_space<vmem>>, %arg7: memref<1x128x128xbf16, #tpu.memory_space<vmem>>, %arg8: memref<128x128xf32, #tpu.memory_space<vmem>>) attributes {dimension_semantics = [#tpu.dimension_semantics<parallel>, #tpu.dimension_semantics<arbitrary>], iteration_bounds = array<i64: 5, 1>, scalar_prefetch = 1 : i64, scratch_operands = 0 : i64, tpu.core_type = #tpu.core_type<tc>, window_params = [{transform_indices = @transform_0, window_bounds = array<i64: 128, 128>}, {transform_indices = @transform_1, window_bounds = array<i64: 128, 1>}, {transform_indices = @transform_2, window_bounds = array<i64: 1, 128, 128>}, {transform_indices = @transform_3, window_bounds = array<i64: 1, 128, 128>}, {transform_indices = @transform_4, window_bounds = array<i64: 1, 128, 128>}, {transform_indices = @transform_5, window_bounds = array<i64: 128, 128>}]} {
    %c0_i32 = arith.constant 0 : i32
    %0 = arith.cmpi eq, %arg1, %c0_i32 : i32
    %1 = arith.extui %0 : i1 to i32
    %c0_i32_0 = arith.constant 0 : i32
    %2 = arith.cmpi ne, %1, %c0_i32_0 : i32
    scf.if %2 {
      %cst_20 = arith.constant 0.000000e+00 : f32
      %27 = vector.broadcast %cst_20 : f32 to vector<128x128xf32>
      %c0_21 = arith.constant 0 : index
      %c0_22 = arith.constant 0 : index
      %28 = vector.load %arg8[%c0_21, %c0_22] : memref<128x128xf32, #tpu.memory_space<vmem>>, vector<128x128xf32>
      tpu.vector_store %arg8[%c0_21, %c0_22], %27 {strides = array<i32>} : memref<128x128xf32, #tpu.memory_space<vmem>>, vector<128x128xf32>,
    } else {
    }
    %c0 = arith.constant 0 : index
    %c0_1 = arith.constant 0 : index
    %3 = vector.load %arg3[%c0, %c0_1] : memref<128x128xbf16, #tpu.memory_space<vmem>>, vector<128x128xbf16>
    %c0_2 = arith.constant 0 : index
    %c0_3 = arith.constant 0 : index
    %c0_4 = arith.constant 0 : index
    %4 = vector.load %arg5[%c0_2, %c0_3, %c0_4] : memref<1x128x128xbf16, #tpu.memory_space<vmem>>, vector<1x128x128xbf16>
    %5 = vector.shape_cast %4 : vector<1x128x128xbf16> to vector<128x128xbf16>
    %cst = arith.constant dense<0.000000e+00> : vector<128x128xf32>
    %6 = tpu.matmul %3, %5, %cst {dimension_numbers = #tpu.dot_dimension_numbers<[1], [0], [0], [1], [0, 0, 1, 1], [], []>} : vector<128x128xbf16>, vector<128x128xbf16>, vector<128x128xf32> -> vector<128x128xf32>
    %c0_5 = arith.constant 0 : index
    %c0_6 = arith.constant 0 : index
    %c0_7 = arith.constant 0 : index
    %7 = vector.load %arg6[%c0_5, %c0_6, %c0_7] : memref<1x128x128xbf16, #tpu.memory_space<vmem>>, vector<1x128x128xbf16>
    %8 = vector.shape_cast %7 : vector<1x128x128xbf16> to vector<128x128xbf16>
    %cst_8 = arith.constant dense<0.000000e+00> : vector<128x128xf32>
    %9 = tpu.matmul %3, %8, %cst_8 {dimension_numbers = #tpu.dot_dimension_numbers<[1], [0], [0], [1], [0, 0, 1, 1], [], []>} : vector<128x128xbf16>, vector<128x128xbf16>, vector<128x128xf32> -> vector<128x128xf32>
    %10 = arith.negf %6 : vector<128x128xf32>
    %11 = math.exp %10 : vector<128x128xf32>
    %cst_9 = arith.constant 1.000000e+00 : f32
    %12 = vector.broadcast %cst_9 : f32 to vector<128x128xf32>
    %13 = arith.addf %12, %11 : vector<128x128xf32>
    %14 = arith.divf %12, %13 : vector<128x128xf32>
    %15 = arith.mulf %6, %14 : vector<128x128xf32>
    %16 = arith.mulf %15, %9 : vector<128x128xf32>
    %c0_10 = arith.constant 0 : index
    %c0_11 = arith.constant 0 : index
    %17 = vector.load %arg8[%c0_10, %c0_11] : memref<128x128xf32, #tpu.memory_space<vmem>>, vector<128x128xf32>
    %18 = arith.truncf %16 : vector<128x128xf32> to vector<128x128xbf16>
    %c0_12 = arith.constant 0 : index
    %c0_13 = arith.constant 0 : index
    %c0_14 = arith.constant 0 : index
    %19 = vector.load %arg7[%c0_12, %c0_13, %c0_14] : memref<1x128x128xbf16, #tpu.memory_space<vmem>>, vector<1x128x128xbf16>
    %20 = vector.shape_cast %19 : vector<1x128x128xbf16> to vector<128x128xbf16>
    %cst_15 = arith.constant dense<0.000000e+00> : vector<128x128xf32>
    %21 = tpu.matmul %18, %20, %cst_15 {dimension_numbers = #tpu.dot_dimension_numbers<[1], [0], [0], [1], [0, 0, 1, 1], [], []>} : vector<128x128xbf16>, vector<128x128xbf16>, vector<128x128xf32> -> vector<128x128xf32>
    %22 = arith.addf %17, %21 : vector<128x128xf32>
    %c0_16 = arith.constant 0 : index
    %c0_17 = arith.constant 0 : index
    %23 = vector.load %arg8[%c0_16, %c0_17] : memref<128x128xf32, #tpu.memory_space<vmem>>, vector<128x128xf32>
    tpu.vector_store %arg8[%c0_16, %c0_17], %22 {strides = array<i32>} : memref<128x128xf32, #tpu.memory_space<vmem>>, vector<128x128xf32>,
    %c0_i32_18 = arith.constant 0 : i32
    %24 = arith.cmpi eq, %arg1, %c0_i32_18 : i32
    %25 = arith.extui %24 : i1 to i32
    %c0_i32_19 = arith.constant 0 : i32
    %26 = arith.cmpi ne, %25, %c0_i32_19 : i32
    scf.if %26 {
      %c0_20 = arith.constant 0 : index
      %c0_21 = arith.constant 0 : index
      %27 = vector.load %arg8[%c0_20, %c0_21] : memref<128x128xf32, #tpu.memory_space<vmem>>, vector<128x128xf32>
      %c0_22 = arith.constant 0 : index
      %c0_23 = arith.constant 0 : index
      %28 = vector.load %arg4[%c0_22, %c0_23] : memref<128x1xf32, #tpu.memory_space<vmem>>, vector<128x1xf32>
      %29 = vector.broadcast %28 : vector<128x1xf32> to vector<128x128xf32>
      %30 = arith.mulf %27, %29 : vector<128x128xf32>
      %c0_24 = arith.constant 0 : index
      %c0_25 = arith.constant 0 : index
      %31 = vector.load %arg8[%c0_24, %c0_25] : memref<128x128xf32, #tpu.memory_space<vmem>>, vector<128x128xf32>
      tpu.vector_store %arg8[%c0_24, %c0_25], %30 {strides = array<i32>} : memref<128x128xf32, #tpu.memory_space<vmem>>, vector<128x128xf32>,
    } else {
    }
    return
  }
  func.func @transform_0(%arg0: i32, %arg1: i32, %arg2: memref<5xi32, #tpu.memory_space<smem>>) -> (i32, i32) {
    %c0_i32 = arith.constant 0 : i32
    %c0_i32_0 = arith.constant 0 : i32
    return %arg0, %c0_i32 : i32, i32
  }
  func.func @transform_1(%arg0: i32, %arg1: i32, %arg2: memref<5xi32, #tpu.memory_space<smem>>) -> (i32, i32) {
    %c0_i32 = arith.constant 0 : i32
    %c0_i32_0 = arith.constant 0 : i32
    return %arg0, %c0_i32 : i32, i32
  }
  func.func @transform_2(%arg0: i32, %arg1: i32, %arg2: memref<5xi32, #tpu.memory_space<smem>>) -> (i32, i32, i32) {
    %0 = arith.index_cast %arg0 : i32 to index
    %1 = memref.load %arg2[%0] : memref<5xi32, #tpu.memory_space<smem>>
    %c0_i32 = arith.constant 0 : i32
    %c0_i32_0 = arith.constant 0 : i32
    return %1, %c0_i32, %arg1 : i32, i32, i32
  }
  func.func @transform_3(%arg0: i32, %arg1: i32, %arg2: memref<5xi32, #tpu.memory_space<smem>>) -> (i32, i32, i32) {
    %0 = arith.index_cast %arg0 : i32 to index
    %1 = memref.load %arg2[%0] : memref<5xi32, #tpu.memory_space<smem>>
    %c0_i32 = arith.constant 0 : i32
    %c0_i32_0 = arith.constant 0 : i32
    return %1, %c0_i32, %arg1 : i32, i32, i32
  }
  func.func @transform_4(%arg0: i32, %arg1: i32, %arg2: memref<5xi32, #tpu.memory_space<smem>>) -> (i32, i32, i32) {
    %0 = arith.index_cast %arg0 : i32 to index
    %1 = memref.load %arg2[%0] : memref<5xi32, #tpu.memory_space<smem>>
    %c0_i32 = arith.constant 0 : i32
    %c0_i32_0 = arith.constant 0 : i32
    return %1, %arg1, %c0_i32 : i32, i32, i32
  }
  func.func @transform_5(%arg0: i32, %arg1: i32, %arg2: memref<5xi32, #tpu.memory_space<smem>>) -> (i32, i32) {
    %c0_i32 = arith.constant 0 : i32
    %c0_i32_0 = arith.constant 0 : i32
    return %arg0, %c0_i32 : i32, i32
  }
}

</mosaic_0001>

<llo_original>
// kernel: moe_forward.1
$region0: #{moe_forward.1}
  #allocation0 [shape = 'u32[]', space=smem, size = 0x4, offset = 0x4, fixed_abs, tag = 'smem constant byte address 0x4 - core index']
  #allocation1 [shape = 'u32[144,128]{1,0:T(1,128)}', space=vmem, size = 0x12000, scoped, tag = 'internal scratch']
  #allocation2 [shape = 's32[1]{0}', space=sflag, size = 0x4, scoped, tag = 'scoped memory for moe_forward.1']
  #allocation3 [shape = 'u8[512]{0}', space=smem, size = 0x200, scoped, tag = 'prefetched SMEM operand 0']
  %s0 = inlined_call_operand.vmem [shape: s32[5], index: 0, kind: input, shape index: {}]
  %s1 = inlined_call_operand.vmem [shape: bf16[640,128], index: 1, kind: input, shape index: {}]
  %s2 = inlined_call_operand.vmem [shape: f32[640,1], index: 2, kind: input, shape index: {}]
  %s3 = inlined_call_operand.vmem [shape: bf16[4,128,128], index: 3, kind: input, shape index: {}]
  %s4 = inlined_call_operand.vmem [shape: bf16[4,128,128], index: 4, kind: input, shape index: {}]
  %s5 = inlined_call_operand.vmem [shape: bf16[4,128,128], index: 5, kind: input, shape index: {}]
  %s6 = inlined_call_operand.vmem [shape: f32[640,128], index: 6, kind: output, shape index: {}]
  %s7 = sld [smem:[#allocation0]]
  $region61: #{moe_forward.1} parent=0
    _
  %s9 = ssub.s32 1, %s7
  %s10 = scalar_select 0, %s9, %s7
  %s11 = sshll.u32 %s0, 4
  %s12 = int_to_ptr.vmem [resolvable:$true] %s11
  %14 = dma.vmem_to_smem %s12, 16, [#allocation3], [#allocation2]
  %15 = dma.done [#allocation2], 16
  %16 = sfence
  loop: start=0, step=1, limit=7
  $region2: #{moe_forward.1} parent=0 // loop_pre_header
    _
  $region3: #{moe_forward.1} parent=0 // loop_header
    %s18 = sphi 0, %s22
    %p19 = scmp.ge.s32.totalorder %s18, 7
    %s25 = sphi 0, %s37
    %s26 = sphi 0, %s33
    %s27 = sphi 0, %s25
    %s28 = sphi 0, %s26
    %s29 = sphi 0, %s27
    %s30 = sphi 0, %s28
    %s40 = sphi 0, %s42
    %s43 = sphi 0, %s40
    %s44 = sphi 0, %s43
    %s60 = sphi 0, %s44
    %s66 = sphi 0, %s68
    %s69 = sphi 0, %s66
    %s70 = sphi 0, %s69
    %s86 = sphi 0, %s70
    %s96 = sphi 0, %s98
    %s99 = sphi 0, %s96
    %s100 = sphi 0, %s99
    %s116 = sphi 0, %s100
    %s126 = sphi 0, %s128
    %s129 = sphi 0, %s126
    %s130 = sphi 0, %s129
    %s146 = sphi 0, %s130
    %s156 = sphi 0, %s158
    %s159 = sphi 0, %s156
    %s160 = sphi 0, %s159
    %s176 = sphi 0, %s160
    %s182 = sphi 0, %s184
    %s185 = sphi 0, %s182
    %s186 = sphi 0, %s185
    %s202 = sphi 0, %s186
  $region4: #{moe_forward.1} parent=0 // loop_header_branch
    %21 = sbr.rel (%p19) target = $region8
  $region5: #{moe_forward.1} parent=0 // loop_body
    %s23 = ssub.s32 %s18, 1
    %s24 = ssub.s32 %s18, 2
    %s31 = sadd.s32 1, %s26
    %p32 = scmp.ge.s32.totalorder %s31, 1
    %s33 = scalar_select %p32, 0, %s31
    %s34 = sadd.s32 1, %s25
    %s35 = scalar_select %p32, %s34, %s25
    %p36 = scmp.ge.s32.totalorder %s35, 5
    %s37 = scalar_select %p36, 0, %s35
    %s38 = ssub.s32 %s25, %s37
    %p39 = scmp.eq.s32.totalorder %s38, 0
    %s41 = sadd.s32 %s40, 1
    %s42 = scalar_select %p39, %s40, %s41
    %p45 = pneg %p39
    %p46 = scmp.eq.s32.totalorder %s18, 4
    %p47 = por %p45, %p46
    %p48 = scmp.ne.s32.totalorder %s40, %s43
    %p49 = scmp.eq.s32.totalorder %s18, 0
    %p50 = por %p48, %p49
    %p51 = scmp.ne.s32.totalorder %s40, %s43
    %p52 = scmp.eq.s32.totalorder %s23, 4
    %p53 = por %p51, %p52
    %p54 = scmp.ne.s32.totalorder %s43, %s44
    %p55 = scmp.eq.s32.totalorder %s23, 0
    %p56 = por %p54, %p55
    %p57 = scmp.ne.s32.totalorder %s43, %s44
    %p58 = scmp.eq.s32.totalorder %s24, 4
    %p59 = por %p57, %p58
    %p61 = scmp.ne.s32.totalorder %s44, %s60
    %p62 = scmp.eq.s32.totalorder %s24, 0
    %p63 = por %p61, %p62
    %s64 = ssub.s32 %s25, %s37
    %p65 = scmp.eq.s32.totalorder %s64, 0
    %s67 = sadd.s32 %s66, 1
    %s68 = scalar_select %p65, %s66, %s67
    %p71 = pneg %p65
    %p72 = scmp.eq.s32.totalorder %s18, 4
    %p73 = por %p71, %p72
    %p74 = scmp.ne.s32.totalorder %s66, %s69
    %p75 = scmp.eq.s32.totalorder %s18, 0
    %p76 = por %p74, %p75
    %p77 = scmp.ne.s32.totalorder %s66, %s69
    %p78 = scmp.eq.s32.totalorder %s23, 4
    %p79 = por %p77, %p78
    %p80 = scmp.ne.s32.totalorder %s69, %s70
    %p81 = scmp.eq.s32.totalorder %s23, 0
    %p82 = por %p80, %p81
    %p83 = scmp.ne.s32.totalorder %s69, %s70
    %p84 = scmp.eq.s32.totalorder %s24, 4
    %p85 = por %p83, %p84
    %p87 = scmp.ne.s32.totalorder %s70, %s86
    %p88 = scmp.eq.s32.totalorder %s24, 0
    %p89 = por %p87, %p88
    %s90 = sld [smem:[#allocation3 + %s25]]
    %s91 = sld [smem:[#allocation3 + %s37]]
    %s92 = ssub.s32 %s90, %s91
    %s93 = ssub.s32 %s26, %s33
    %s94 = sor.u32 %s92, %s93
    %p95 = scmp.eq.s32.totalorder %s94, 0
    %s97 = sadd.s32 %s96, 1
    %s98 = scalar_select %p95, %s96, %s97
    %p101 = pneg %p95
    %p102 = scmp.eq.s32.totalorder %s18, 4
    %p103 = por %p101, %p102
    %p104 = scmp.ne.s32.totalorder %s96, %s99
    %p105 = scmp.eq.s32.totalorder %s18, 0
    %p106 = por %p104, %p105
    %p107 = scmp.ne.s32.totalorder %s96, %s99
    %p108 = scmp.eq.s32.totalorder %s23, 4
    %p109 = por %p107, %p108
    %p110 = scmp.ne.s32.totalorder %s99, %s100
    %p111 = scmp.eq.s32.totalorder %s23, 0
    %p112 = por %p110, %p111
    %p113 = scmp.ne.s32.totalorder %s99, %s100
    %p114 = scmp.eq.s32.totalorder %s24, 4
    %p115 = por %p113, %p114
    %p117 = scmp.ne.s32.totalorder %s100, %s116
    %p118 = scmp.eq.s32.totalorder %s24, 0
    %p119 = por %p117, %p118
    %s120 = sld [smem:[#allocation3 + %s25]]
    %s121 = sld [smem:[#allocation3 + %s37]]
    %s122 = ssub.s32 %s120, %s121
    %s123 = ssub.s32 %s26, %s33
    %s124 = sor.u32 %s122, %s123
    %p125 = scmp.eq.s32.totalorder %s124, 0
    %s127 = sadd.s32 %s126, 1
    %s128 = scalar_select %p125, %s126, %s127
    %p131 = pneg %p125
    %p132 = scmp.eq.s32.totalorder %s18, 4
    %p133 = por %p131, %p132
    %p134 = scmp.ne.s32.totalorder %s126, %s129
    %p135 = scmp.eq.s32.totalorder %s18, 0
    %p136 = por %p134, %p135
    %p137 = scmp.ne.s32.totalorder %s126, %s129
    %p138 = scmp.eq.s32.totalorder %s23, 4
    %p139 = por %p137, %p138
    %p140 = scmp.ne.s32.totalorder %s129, %s130
    %p141 = scmp.eq.s32.totalorder %s23, 0
    %p142 = por %p140, %p141
    %p143 = scmp.ne.s32.totalorder %s129, %s130
    %p144 = scmp.eq.s32.totalorder %s24, 4
    %p145 = por %p143, %p144
    %p147 = scmp.ne.s32.totalorder %s130, %s146
    %p148 = scmp.eq.s32.totalorder %s24, 0
    %p149 = por %p147, %p148
    %s150 = sld [smem:[#allocation3 + %s25]]
    %s151 = sld [smem:[#allocation3 + %s37]]
    %s152 = ssub.s32 %s150, %s151
    %s153 = ssub.s32 %s26, %s33
    %s154 = sor.u32 %s152, %s153
    %p155 = scmp.eq.s32.totalorder %s154, 0
    %s157 = sadd.s32 %s156, 1
    %s158 = scalar_select %p155, %s156, %s157
    %p161 = pneg %p155
    %p162 = scmp.eq.s32.totalorder %s18, 4
    %p163 = por %p161, %p162
    %p164 = scmp.ne.s32.totalorder %s156, %s159
    %p165 = scmp.eq.s32.totalorder %s18, 0
    %p166 = por %p164, %p165
    %p167 = scmp.ne.s32.totalorder %s156, %s159
    %p168 = scmp.eq.s32.totalorder %s23, 4
    %p169 = por %p167, %p168
    %p170 = scmp.ne.s32.totalorder %s159, %s160
    %p171 = scmp.eq.s32.totalorder %s23, 0
    %p172 = por %p170, %p171
    %p173 = scmp.ne.s32.totalorder %s159, %s160
    %p174 = scmp.eq.s32.totalorder %s24, 4
    %p175 = por %p173, %p174
    %p177 = scmp.ne.s32.totalorder %s160, %s176
    %p178 = scmp.eq.s32.totalorder %s24, 0
    %p179 = por %p177, %p178
    %s180 = ssub.s32 %s25, %s37
    %p181 = scmp.eq.s32.totalorder %s180, 0
    %s183 = sadd.s32 %s182, 1
    %s184 = scalar_select %p181, %s182, %s183
    %p187 = pneg %p181
    %p188 = scmp.eq.s32.totalorder %s18, 4
    %p189 = por %p187, %p188
    %p190 = scmp.ne.s32.totalorder %s182, %s185
    %p191 = scmp.eq.s32.totalorder %s18, 0
    %p192 = por %p190, %p191
    %p193 = scmp.ne.s32.totalorder %s182, %s185
    %p194 = scmp.eq.s32.totalorder %s23, 4
    %p195 = por %p193, %p194
    %p196 = scmp.ne.s32.totalorder %s185, %s186
    %p197 = scmp.eq.s32.totalorder %s23, 0
    %p198 = por %p196, %p197
    %p199 = scmp.ne.s32.totalorder %s185, %s186
    %p200 = scmp.eq.s32.totalorder %s24, 4
    %p201 = por %p199, %p200
    %p203 = scmp.ne.s32.totalorder %s186, %s202
    %p204 = scmp.eq.s32.totalorder %s24, 0
    %p205 = por %p203, %p204
    %p206 = scmp.le.s32.totalorder 1, %s18
    %p207 = scmp.lt.s32.totalorder %s18, 6
    %p208 = pnand %p206, %p207
    %p209 = pneg %p208
    // Predicated region
    $region9: #{moe_forward.1} parent=5 // pred_check
      _
    $region10: #{moe_forward.1} parent=5 // pred_check_branch
      %211 = sbr.rel (%p208) target = $region12
    $region11: #{moe_forward.1} parent=5 // pred_region
      %s212 = ssub.s32 %s18, 1
    $region12: #{moe_forward.1} parent=5 // pred_fallthru
      _
    %p213 = scmp.lt.s32.totalorder %s18, 5
    // Predicated region
    $region13: #{moe_forward.1} parent=5 // pred_check
      %p214 = pneg %p213
    $region14: #{moe_forward.1} parent=5 // pred_check_branch
      %216 = sbr.rel (%p214) target = $region16
    $region15: #{moe_forward.1} parent=5 // pred_region
      // Predicated region
      $region17: #{moe_forward.1} parent=15 // pred_check
        %p217 = pneg %p50
      $region18: #{moe_forward.1} parent=15 // pred_check_branch
        %219 = sbr.rel (%p217) target = $region20
      $region19: #{moe_forward.1} parent=15 // pred_region
        %s220 = smul.u32 16, %s25
        %p221 = scmp.lt.s32.totalorder %s220, 79
        %s222 = scalar_select %p221, %s220, 79
        %s223 = smul.addr %s222, 4
        %s224 = scalar_lea.vmem %s1, %s223
        %s225 = smul.u32 16, %s25
      $region20: #{moe_forward.1} parent=15 // pred_fallthru
        _
      // Predicated region
      $region21: #{moe_forward.1} parent=15 // pred_check
        %p226 = pneg %p76
      $region22: #{moe_forward.1} parent=15 // pred_check_branch
        %228 = sbr.rel (%p226) target = $region24
      $region23: #{moe_forward.1} parent=15 // pred_region
        %s229 = smul.u32 16, %s25
        %p230 = scmp.lt.s32.totalorder %s229, 79
        %s231 = scalar_select %p230, %s229, 79
        %s232 = smul.addr %s231, 8
        %s233 = scalar_lea.vmem %s2, %s232
        %s234 = smul.u32 16, %s25
      $region24: #{moe_forward.1} parent=15 // pred_fallthru
        _
      // Predicated region
      $region25: #{moe_forward.1} parent=15 // pred_check
        %p235 = pneg %p106
      $region26: #{moe_forward.1} parent=15 // pred_check_branch
        %237 = sbr.rel (%p235) target = $region28
      $region27: #{moe_forward.1} parent=15 // pred_region
        %s238 = sld [smem:[#allocation3 + %s25]]
        %p239 = scmp.lt.s32.totalorder %s238, 3
        %s240 = scalar_select %p239, %s238, 3
        %p241 = scmp.lt.s32.totalorder %s26, 0
        %s242 = scalar_select %p241, %s26, 0
        %s243 = smul.addr %s240, 16
        %s244 = sadd.s32 %s242, %s243
        %s245 = smul.addr %s244, 4
        %s246 = scalar_lea.vmem %s3, %s245
        %s247 = sld [smem:[#allocation3 + %s25]]
      $region28: #{moe_forward.1} parent=15 // pred_fallthru
        _
      // Predicated region
      $region29: #{moe_forward.1} parent=15 // pred_check
        %p248 = pneg %p136
      $region30: #{moe_forward.1} parent=15 // pred_check_branch
        %250 = sbr.rel (%p248) target = $region32
      $region31: #{moe_forward.1} parent=15 // pred_region
        %s251 = sld [smem:[#allocation3 + %s25]]
        %p252 = scmp.lt.s32.totalorder %s251, 3
        %s253 = scalar_select %p252, %s251, 3
        %p254 = scmp.lt.s32.totalorder %s26, 0
        %s255 = scalar_select %p254, %s26, 0
        %s256 = smul.addr %s253, 16
        %s257 = sadd.s32 %s255, %s256
        %s258 = smul.addr %s257, 4
        %s259 = scalar_lea.vmem %s4, %s258
        %s260 = sld [smem:[#allocation3 + %s25]]
      $region32: #{moe_forward.1} parent=15 // pred_fallthru
        _
      // Predicated region
      $region33: #{moe_forward.1} parent=15 // pred_check
        %p261 = pneg %p166
      $region34: #{moe_forward.1} parent=15 // pred_check_branch
        %263 = sbr.rel (%p261) target = $region36
      $region35: #{moe_forward.1} parent=15 // pred_region
        %s264 = sld [smem:[#allocation3 + %s25]]
        %s265 = smul.u32 16, %s26
        %p266 = scmp.lt.s32.totalorder %s264, 3
        %s267 = scalar_select %p266, %s264, 3
        %p268 = scmp.lt.s32.totalorder %s265, 15
        %s269 = scalar_select %p268, %s265, 15
        %s270 = smul.addr %s267, 16
        %s271 = sadd.s32 %s269, %s270
        %s272 = smul.addr %s271, 4
        %s273 = scalar_lea.vmem %s5, %s272
        %s274 = sld [smem:[#allocation3 + %s25]]
        %s275 = smul.u32 16, %s26
      $region36: #{moe_forward.1} parent=15 // pred_fallthru
        _
    $region16: #{moe_forward.1} parent=5 // pred_fallthru
      _
    %p276 = scmp.le.s32.totalorder 1, %s18
    %p277 = scmp.lt.s32.totalorder %s18, 6
    %p278 = pnand %p276, %p277
    %p279 = pneg %p278
    // Predicated region
    $region37: #{moe_forward.1} parent=5 // pred_check
      _
    $region38: #{moe_forward.1} parent=5 // pred_check_branch
      %281 = sbr.rel (%p278) target = $region40
    $region39: #{moe_forward.1} parent=5 // pred_region
      %s282 = ssub.s32 %s18, 1
      %s283 = smul.u32 16, %s27
      %p284 = scmp.lt.s32.totalorder %s283, 79
      %s285 = scalar_select %p284, %s283, 79
      %s286 = smul.addr %s285, 4
      %s287 = scalar_lea.vmem %s1, %s286
      %p288 = pneg %p56
      %p289 = pneg %p53
      %s290 = smul.u32 16, %s27
      %p291 = scmp.lt.s32.totalorder %s290, 79
      %s292 = scalar_select %p291, %s290, 79
      %s293 = smul.addr %s292, 8
      %s294 = scalar_lea.vmem %s2, %s293
      %p295 = pneg %p82
      %p296 = pneg %p79
      %s297 = sld [smem:[#allocation3 + %s27]]
      %p298 = scmp.lt.s32.totalorder %s297, 3
      %s299 = scalar_select %p298, %s297, 3
      %p300 = scmp.lt.s32.totalorder %s28, 0
      %s301 = scalar_select %p300, %s28, 0
      %s302 = smul.addr %s299, 16
      %s303 = sadd.s32 %s301, %s302
      %s304 = smul.addr %s303, 4
      %s305 = scalar_lea.vmem %s3, %s304
      %p306 = pneg %p112
      %p307 = pneg %p109
      %s308 = sld [smem:[#allocation3 + %s27]]
      %p309 = scmp.lt.s32.totalorder %s308, 3
      %s310 = scalar_select %p309, %s308, 3
      %p311 = scmp.lt.s32.totalorder %s28, 0
      %s312 = scalar_select %p311, %s28, 0
      %s313 = smul.addr %s310, 16
      %s314 = sadd.s32 %s312, %s313
      %s315 = smul.addr %s314, 4
      %s316 = scalar_lea.vmem %s4, %s315
      %p317 = pneg %p142
      %p318 = pneg %p139
      %s319 = sld [smem:[#allocation3 + %s27]]
      %s320 = smul.u32 16, %s28
      %p321 = scmp.lt.s32.totalorder %s319, 3
      %s322 = scalar_select %p321, %s319, 3
      %p323 = scmp.lt.s32.totalorder %s320, 15
      %s324 = scalar_select %p323, %s320, 15
      %s325 = smul.addr %s322, 16
      %s326 = sadd.s32 %s324, %s325
      %s327 = smul.addr %s326, 4
      %s328 = scalar_lea.vmem %s5, %s327
      %p329 = pneg %p172
      %p330 = pneg %p169
      %p331 = pneg %p198
      %p332 = pneg %p195
      %s333 = smul.u32 16, %s27
      %p334 = scmp.lt.s32.totalorder %s333, 79
      %s335 = scalar_select %p334, %s333, 79
      %s336 = smul.addr %s335, 8
      %s337 = scalar_lea.vmem %s6, %s336
      %s338 = smul.u32 16, %s27
      %p339 = scmp.lt.s32.totalorder %s338, 79
      %s340 = scalar_select %p339, %s338, 79
      %s341 = smul.addr %s340, 4
      %s342 = scalar_lea.vmem %s1, %s341
      %s343 = smul.u32 16, %s27
      %s344 = smul.u32 16, %s27
      %p345 = scmp.lt.s32.totalorder %s344, 79
      %s346 = scalar_select %p345, %s344, 79
      %s347 = smul.addr %s346, 8
      %s348 = scalar_lea.vmem %s2, %s347
      %s349 = smul.u32 16, %s27
      %s350 = sld [smem:[#allocation3 + %s27]]
      %p351 = scmp.lt.s32.totalorder %s350, 3
      %s352 = scalar_select %p351, %s350, 3
      %p353 = scmp.lt.s32.totalorder %s28, 0
      %s354 = scalar_select %p353, %s28, 0
      %s355 = smul.addr %s352, 16
      %s356 = sadd.s32 %s354, %s355
      %s357 = smul.addr %s356, 4
      %s358 = scalar_lea.vmem %s3, %s357
      %s359 = sld [smem:[#allocation3 + %s27]]
      %s360 = sld [smem:[#allocation3 + %s27]]
      %p361 = scmp.lt.s32.totalorder %s360, 3
      %s362 = scalar_select %p361, %s360, 3
      %p363 = scmp.lt.s32.totalorder %s28, 0
      %s364 = scalar_select %p363, %s28, 0
      %s365 = smul.addr %s362, 16
      %s366 = sadd.s32 %s364, %s365
      %s367 = smul.addr %s366, 4
      %s368 = scalar_lea.vmem %s4, %s367
      %s369 = sld [smem:[#allocation3 + %s27]]
      %s370 = sld [smem:[#allocation3 + %s27]]
      %s371 = smul.u32 16, %s28
      %p372 = scmp.lt.s32.totalorder %s370, 3
      %s373 = scalar_select %p372, %s370, 3
      %p374 = scmp.lt.s32.totalorder %s371, 15
      %s375 = scalar_select %p374, %s371, 15
      %s376 = smul.addr %s373, 16
      %s377 = sadd.s32 %s375, %s376
      %s378 = smul.addr %s377, 4
      %s379 = scalar_lea.vmem %s5, %s378
      %s380 = sld [smem:[#allocation3 + %s27]]
      %s381 = smul.u32 16, %s28
      %s382 = smul.u32 16, %s27
      %p383 = scmp.lt.s32.totalorder %s382, 79
      %s384 = scalar_select %p383, %s382, 79
      %s385 = smul.addr %s384, 8
      %s386 = scalar_lea.vmem %s6, %s385
      %s387 = smul.u32 16, %s27
      %p389 = scmp.eq.s32.totalorder %s28, 0
      // Predicated region
      $region41: #{moe_forward.1} parent=39 // pred_check
        %p390 = pneg %p389
      $region42: #{moe_forward.1} parent=39 // pred_check_branch
        %392 = sbr.rel (%p390) target = $region44
      $region43: #{moe_forward.1} parent=39 // pred_region
        %393 = vst [vmem:[%s386] sm:$0xff] 0.0
        %394 = vst [vmem:[%s386 + $0x8] sm:$0xff] 0.0
        %395 = vst [vmem:[%s386 + $0x10] sm:$0xff] 0.0
        %396 = vst [vmem:[%s386 + $0x18] sm:$0xff] 0.0
        %397 = vst [vmem:[%s386 + $0x20] sm:$0xff] 0.0
        %398 = vst [vmem:[%s386 + $0x28] sm:$0xff] 0.0
        %399 = vst [vmem:[%s386 + $0x30] sm:$0xff] 0.0
        %400 = vst [vmem:[%s386 + $0x38] sm:$0xff] 0.0
        %401 = vst [vmem:[%s386 + $0x40] sm:$0xff] 0.0
        %402 = vst [vmem:[%s386 + $0x48] sm:$0xff] 0.0
        %403 = vst [vmem:[%s386 + $0x50] sm:$0xff] 0.0
        %404 = vst [vmem:[%s386 + $0x58] sm:$0xff] 0.0
        %405 = vst [vmem:[%s386 + $0x60] sm:$0xff] 0.0
        %406 = vst [vmem:[%s386 + $0x68] sm:$0xff] 0.0
        %407 = vst [vmem:[%s386 + $0x70] sm:$0xff] 0.0
        %408 = vst [vmem:[%s386 + $0x78] sm:$0xff] 0.0
      $region44: #{moe_forward.1} parent=39 // pred_fallthru
        _
      %v409 = vld [vmem:[%s342] sm:$0xf]
      %v410 = vld [vmem:[%s342 + $0x4] sm:$0xf]
      %v411 = vld [vmem:[%s342 + $0x8] sm:$0xf]
      %v412 = vld [vmem:[%s342 + $0xc] sm:$0xf]
      %v413 = vld [vmem:[%s342 + $0x10] sm:$0xf]
      %v414 = vld [vmem:[%s342 + $0x14] sm:$0xf]
      %v415 = vld [vmem:[%s342 + $0x18] sm:$0xf]
      %v416 = vld [vmem:[%s342 + $0x1c] sm:$0xf]
      %v417 = vld [vmem:[%s342 + $0x20] sm:$0xf]
      %v418 = vld [vmem:[%s342 + $0x24] sm:$0xf]
      %v419 = vld [vmem:[%s342 + $0x28] sm:$0xf]
      %v420 = vld [vmem:[%s342 + $0x2c] sm:$0xf]
      %v421 = vld [vmem:[%s342 + $0x30] sm:$0xf]
      %v422 = vld [vmem:[%s342 + $0x34] sm:$0xf]
      %v423 = vld [vmem:[%s342 + $0x38] sm:$0xf]
      %v424 = vld [vmem:[%s342 + $0x3c] sm:$0xf]
      %v425 = vld [vmem:[%s358] sm:$0xf]
      %v426 = vld [vmem:[%s358 + $0x4] sm:$0xf]
      %v427 = vld [vmem:[%s358 + $0x8] sm:$0xf]
      %v428 = vld [vmem:[%s358 + $0xc] sm:$0xf]
      %v429 = vld [vmem:[%s358 + $0x10] sm:$0xf]
      %v430 = vld [vmem:[%s358 + $0x14] sm:$0xf]
      %v431 = vld [vmem:[%s358 + $0x18] sm:$0xf]
      %v432 = vld [vmem:[%s358 + $0x1c] sm:$0xf]
      %v433 = vld [vmem:[%s358 + $0x20] sm:$0xf]
      %v434 = vld [vmem:[%s358 + $0x24] sm:$0xf]
      %v435 = vld [vmem:[%s358 + $0x28] sm:$0xf]
      %v436 = vld [vmem:[%s358 + $0x2c] sm:$0xf]
      %v437 = vld [vmem:[%s358 + $0x30] sm:$0xf]
      %v438 = vld [vmem:[%s358 + $0x34] sm:$0xf]
      %v439 = vld [vmem:[%s358 + $0x38] sm:$0xf]
      %v440 = vld [vmem:[%s358 + $0x3c] sm:$0xf]
      %v457 = vunpack.c.l.b16 %v409
      %v458 = vunpack.c.l.b16 %v410
      %v459 = vunpack.c.l.b16 %v411
      %v460 = vunpack.c.l.b16 %v412
      %v461 = vunpack.c.l.b16 %v413
      %v462 = vunpack.c.l.b16 %v414
      %v463 = vunpack.c.l.b16 %v415
      %v464 = vunpack.c.l.b16 %v416
      %v465 = vunpack.c.l.b16 %v417
      %v466 = vunpack.c.l.b16 %v418
      %v467 = vunpack.c.l.b16 %v419
      %v468 = vunpack.c.l.b16 %v420
      %v469 = vunpack.c.l.b16 %v421
      %v470 = vunpack.c.l.b16 %v422
      %v471 = vunpack.c.l.b16 %v423
      %v472 = vunpack.c.l.b16 %v424
      %v473 = vpack.c.b16 %v458, %v457
      %v474 = vpack.c.b16 %v460, %v459
      %v475 = vpack.c.b16 %v462, %v461
      %v476 = vpack.c.b16 %v464, %v463
      %v477 = vpack.c.b16 %v466, %v465
      %v478 = vpack.c.b16 %v468, %v467
      %v479 = vpack.c.b16 %v470, %v469
      %v480 = vpack.c.b16 %v472, %v471
      %v505 = vunpack.c.l.b16 %v425
      %v506 = vunpack.c.l.b16 %v426
      %v507 = vunpack.c.l.b16 %v427
      %v508 = vunpack.c.l.b16 %v428
      %v509 = vunpack.c.l.b16 %v429
      %v510 = vunpack.c.l.b16 %v430
      %v511 = vunpack.c.l.b16 %v431
      %v512 = vunpack.c.l.b16 %v432
      %v513 = vunpack.c.l.b16 %v433
      %v514 = vunpack.c.l.b16 %v434
      %v515 = vunpack.c.l.b16 %v435
      %v516 = vunpack.c.l.b16 %v436
      %v517 = vunpack.c.l.b16 %v437
      %v518 = vunpack.c.l.b16 %v438
      %v519 = vunpack.c.l.b16 %v439
      %v520 = vunpack.c.l.b16 %v440
      %v521 = vpack.c.b16 %v506, %v505
      %v522 = vpack.c.b16 %v508, %v507
      %v523 = vpack.c.b16 %v510, %v509
      %v524 = vpack.c.b16 %v512, %v511
      %v525 = vpack.c.b16 %v514, %v513
      %v526 = vpack.c.b16 %v516, %v515
      %v527 = vpack.c.b16 %v518, %v517
      %v528 = vpack.c.b16 %v520, %v519
      %537 = vmatprep.subr.bf16.mxu0 0
      %538 = vmatpush1.bf16.msra.mxu0 %v521
      %539 = vmatprep.subr.bf16.mxu0 0
      %540 = vmatpush1.bf16.msra.mxu0 %v522
      %541 = vmatprep.subr.bf16.mxu0 0
      %542 = vmatpush1.bf16.msra.mxu0 %v523
      %543 = vmatprep.subr.bf16.mxu0 0
      %544 = vmatpush1.bf16.msra.mxu0 %v524
      %545 = vmatprep.subr.bf16.mxu0 0
      %546 = vmatpush1.bf16.msra.mxu0 %v525
      %547 = vmatprep.subr.bf16.mxu0 0
      %548 = vmatpush1.bf16.msra.mxu0 %v526
      %549 = vmatprep.subr.bf16.mxu0 0
      %550 = vmatpush1.bf16.msra.mxu0 %v527
      %551 = vmatprep.subr.bf16.mxu0 0
      %552 = vmatpush1.bf16.msra.mxu0 %v528
      %553 = vmatprep.subr.bf16.mxu0 0
      %554 = vmatpush1.bf16.msra.mxu0 0
      %555 = vmatprep.subr.bf16.mxu0 0
      %556 = vmatpush1.bf16.msra.mxu0 0
      %557 = vmatprep.subr.bf16.mxu0 0
      %558 = vmatpush1.bf16.msra.mxu0 0
      %559 = vmatprep.subr.bf16.mxu0 0
      %560 = vmatpush1.bf16.msra.mxu0 0
      %561 = vmatprep.subr.bf16.mxu0 0
      %562 = vmatpush1.bf16.msra.mxu0 0
      %563 = vmatprep.subr.bf16.mxu0 0
      %564 = vmatpush1.bf16.msra.mxu0 0
      %565 = vmatprep.subr.bf16.mxu0 0
      %566 = vmatpush1.bf16.msra.mxu0 0
      %567 = vmatprep.subr.bf16.mxu0 0
      %568 = vmatpush1.bf16.msra.mxu0 0
      %569 = vmatprep.mubr.bf16.mxu0 0
      %570 = vmatmul.mubr.bf16.gmra.mrb[0].mxu0 %v473
      %v571 = vpop.f32.mrb[0].mxu0
      %v572 = vadd.f32 0.0, %v571
      %v573 = vpop.f32.mrb[0].mxu0
      %v574 = vpop.f32.mrb[0].mxu0
      %v575 = vadd.f32 0.0, %v574
      %v576 = vpop.f32.mrb[0].mxu0
      %577 = vmatprep.mubr.bf16.mxu0 0
      %578 = vmatmul.mubr.bf16.gmra.mrb[0].mxu0 %v474
      %v579 = vpop.f32.mrb[0].mxu0
      %v580 = vadd.f32 0.0, %v579
      %v581 = vpop.f32.mrb[0].mxu0
      %v582 = vpop.f32.mrb[0].mxu0
      %v583 = vadd.f32 0.0, %v582
      %v584 = vpop.f32.mrb[0].mxu0
      %585 = vmatprep.mubr.bf16.mxu0 0
      %586 = vmatmul.mubr.bf16.gmra.mrb[0].mxu0 %v475
      %v587 = vpop.f32.mrb[0].mxu0
      %v588 = vadd.f32 0.0, %v587
      %v589 = vpop.f32.mrb[0].mxu0
      %v590 = vpop.f32.mrb[0].mxu0
      %v591 = vadd.f32 0.0, %v590
      %v592 = vpop.f32.mrb[0].mxu0
      %593 = vmatprep.mubr.bf16.mxu0 0
      %594 = vmatmul.mubr.bf16.gmra.mrb[0].mxu0 %v476
      %v595 = vpop.f32.mrb[0].mxu0
      %v596 = vadd.f32 0.0, %v595
      %v597 = vpop.f32.mrb[0].mxu0
      %v598 = vpop.f32.mrb[0].mxu0
      %v599 = vadd.f32 0.0, %v598
      %v600 = vpop.f32.mrb[0].mxu0
      %601 = vmatprep.mubr.bf16.mxu0 0
      %602 = vmatmul.mubr.bf16.gmra.mrb[0].mxu0 %v477
      %v603 = vpop.f32.mrb[0].mxu0
      %v604 = vadd.f32 0.0, %v603
      %v605 = vpop.f32.mrb[0].mxu0
      %v606 = vpop.f32.mrb[0].mxu0
      %v607 = vadd.f32 0.0, %v606
      %v608 = vpop.f32.mrb[0].mxu0
      %609 = vmatprep.mubr.bf16.mxu0 0
      %610 = vmatmul.mubr.bf16.gmra.mrb[0].mxu0 %v478
      %v611 = vpop.f32.mrb[0].mxu0
      %v612 = vadd.f32 0.0, %v611
      %v613 = vpop.f32.mrb[0].mxu0
      %v614 = vpop.f32.mrb[0].mxu0
      %v615 = vadd.f32 0.0, %v614
      %v616 = vpop.f32.mrb[0].mxu0
      %617 = vmatprep.mubr.bf16.mxu0 0
      %618 = vmatmul.mubr.bf16.gmra.mrb[0].mxu0 %v479
      %v619 = vpop.f32.mrb[0].mxu0
      %v620 = vadd.f32 0.0, %v619
      %v621 = vpop.f32.mrb[0].mxu0
      %v622 = vpop.f32.mrb[0].mxu0
      %v623 = vadd.f32 0.0, %v622
      %v624 = vpop.f32.mrb[0].mxu0
      %625 = vmatprep.mubr.bf16.mxu0 0
      %626 = vmatmul.mubr.bf16.gmra.mrb[0].mxu0 %v480
      %v627 = vpop.f32.mrb[0].mxu0
      %v628 = vadd.f32 0.0, %v627
      %v629 = vpop.f32.mrb[0].mxu0
      %v630 = vpop.f32.mrb[0].mxu0
      %v631 = vadd.f32 0.0, %v630
      %v632 = vpop.f32.mrb[0].mxu0
      %633 = vdwg.mxu0
      %v634 = vld [vmem:[%s368] sm:$0xf]
      %v635 = vld [vmem:[%s368 + $0x4] sm:$0xf]
      %v636 = vld [vmem:[%s368 + $0x8] sm:$0xf]
      %v637 = vld [vmem:[%s368 + $0xc] sm:$0xf]
      %v638 = vld [vmem:[%s368 + $0x10] sm:$0xf]
      %v639 = vld [vmem:[%s368 + $0x14] sm:$0xf]
      %v640 = vld [vmem:[%s368 + $0x18] sm:$0xf]
      %v641 = vld [vmem:[%s368 + $0x1c] sm:$0xf]
      %v642 = vld [vmem:[%s368 + $0x20] sm:$0xf]
      %v643 = vld [vmem:[%s368 + $0x24] sm:$0xf]
      %v644 = vld [vmem:[%s368 + $0x28] sm:$0xf]
      %v645 = vld [vmem:[%s368 + $0x2c] sm:$0xf]
      %v646 = vld [vmem:[%s368 + $0x30] sm:$0xf]
      %v647 = vld [vmem:[%s368 + $0x34] sm:$0xf]
      %v648 = vld [vmem:[%s368 + $0x38] sm:$0xf]
      %v649 = vld [vmem:[%s368 + $0x3c] sm:$0xf]
      %v666 = vunpack.c.l.b16 %v634
      %v667 = vunpack.c.l.b16 %v635
      %v668 = vunpack.c.l.b16 %v636
      %v669 = vunpack.c.l.b16 %v637
      %v670 = vunpack.c.l.b16 %v638
      %v671 = vunpack.c.l.b16 %v639
      %v672 = vunpack.c.l.b16 %v640
      %v673 = vunpack.c.l.b16 %v641
      %v674 = vunpack.c.l.b16 %v642
      %v675 = vunpack.c.l.b16 %v643
      %v676 = vunpack.c.l.b16 %v644
      %v677 = vunpack.c.l.b16 %v645
      %v678 = vunpack.c.l.b16 %v646
      %v679 = vunpack.c.l.b16 %v647
      %v680 = vunpack.c.l.b16 %v648
      %v681 = vunpack.c.l.b16 %v649
      %v682 = vpack.c.b16 %v667, %v666
      %v683 = vpack.c.b16 %v669, %v668
      %v684 = vpack.c.b16 %v671, %v670
      %v685 = vpack.c.b16 %v673, %v672
      %v686 = vpack.c.b16 %v675, %v674
      %v687 = vpack.c.b16 %v677, %v676
      %v688 = vpack.c.b16 %v679, %v678
      %v689 = vpack.c.b16 %v681, %v680
      %698 = vmatprep.subr.bf16.mxu0 0
      %699 = vmatpush1.bf16.msra.mxu0 %v682
      %700 = vmatprep.subr.bf16.mxu0 0
      %701 = vmatpush1.bf16.msra.mxu0 %v683
      %702 = vmatprep.subr.bf16.mxu0 0
      %703 = vmatpush1.bf16.msra.mxu0 %v684
      %704 = vmatprep.subr.bf16.mxu0 0
      %705 = vmatpush1.bf16.msra.mxu0 %v685
      %706 = vmatprep.subr.bf16.mxu0 0
      %707 = vmatpush1.bf16.msra.mxu0 %v686
      %708 = vmatprep.subr.bf16.mxu0 0
      %709 = vmatpush1.bf16.msra.mxu0 %v687
      %710 = vmatprep.subr.bf16.mxu0 0
      %711 = vmatpush1.bf16.msra.mxu0 %v688
      %712 = vmatprep.subr.bf16.mxu0 0
      %713 = vmatpush1.bf16.msra.mxu0 %v689
      %714 = vmatprep.subr.bf16.mxu0 0
      %715 = vmatpush1.bf16.msra.mxu0 0
      %716 = vmatprep.subr.bf16.mxu0 0
      %717 = vmatpush1.bf16.msra.mxu0 0
      %718 = vmatprep.subr.bf16.mxu0 0
      %719 = vmatpush1.bf16.msra.mxu0 0
      %720 = vmatprep.subr.bf16.mxu0 0
      %721 = vmatpush1.bf16.msra.mxu0 0
      %722 = vmatprep.subr.bf16.mxu0 0
      %723 = vmatpush1.bf16.msra.mxu0 0
      %724 = vmatprep.subr.bf16.mxu0 0
      %725 = vmatpush1.bf16.msra.mxu0 0
      %726 = vmatprep.subr.bf16.mxu0 0
      %727 = vmatpush1.bf16.msra.mxu0 0
      %728 = vmatprep.subr.bf16.mxu0 0
      %729 = vmatpush1.bf16.msra.mxu0 0
      %730 = vmatprep.mubr.bf16.mxu0 0
      %731 = vmatmul.mubr.bf16.gmra.mrb[0].mxu0 %v473
      %v732 = vpop.f32.mrb[0].mxu0
      %v733 = vadd.f32 0.0, %v732
      %v734 = vpop.f32.mrb[0].mxu0
      %v735 = vpop.f32.mrb[0].mxu0
      %v736 = vadd.f32 0.0, %v735
      %v737 = vpop.f32.mrb[0].mxu0
      %738 = vmatprep.mubr.bf16.mxu0 0
      %739 = vmatmul.mubr.bf16.gmra.mrb[0].mxu0 %v474
      %v740 = vpop.f32.mrb[0].mxu0
      %v741 = vadd.f32 0.0, %v740
      %v742 = vpop.f32.mrb[0].mxu0
      %v743 = vpop.f32.mrb[0].mxu0
      %v744 = vadd.f32 0.0, %v743
      %v745 = vpop.f32.mrb[0].mxu0
      %746 = vmatprep.mubr.bf16.mxu0 0
      %747 = vmatmul.mubr.bf16.gmra.mrb[0].mxu0 %v475
      %v748 = vpop.f32.mrb[0].mxu0
      %v749 = vadd.f32 0.0, %v748
      %v750 = vpop.f32.mrb[0].mxu0
      %v751 = vpop.f32.mrb[0].mxu0
      %v752 = vadd.f32 0.0, %v751
      %v753 = vpop.f32.mrb[0].mxu0
      %754 = vmatprep.mubr.bf16.mxu0 0
      %755 = vmatmul.mubr.bf16.gmra.mrb[0].mxu0 %v476
      %v756 = vpop.f32.mrb[0].mxu0
      %v757 = vadd.f32 0.0, %v756
      %v758 = vpop.f32.mrb[0].mxu0
      %v759 = vpop.f32.mrb[0].mxu0
      %v760 = vadd.f32 0.0, %v759
      %v761 = vpop.f32.mrb[0].mxu0
      %762 = vmatprep.mubr.bf16.mxu0 0
      %763 = vmatmul.mubr.bf16.gmra.mrb[0].mxu0 %v477
      %v764 = vpop.f32.mrb[0].mxu0
      %v765 = vadd.f32 0.0, %v764
      %v766 = vpop.f32.mrb[0].mxu0
      %v767 = vpop.f32.mrb[0].mxu0
      %v768 = vadd.f32 0.0, %v767
      %v769 = vpop.f32.mrb[0].mxu0
      %770 = vmatprep.mubr.bf16.mxu0 0
      %771 = vmatmul.mubr.bf16.gmra.mrb[0].mxu0 %v478
      %v772 = vpop.f32.mrb[0].mxu0
      %v773 = vadd.f32 0.0, %v772
      %v774 = vpop.f32.mrb[0].mxu0
      %v775 = vpop.f32.mrb[0].mxu0
      %v776 = vadd.f32 0.0, %v775
      %v777 = vpop.f32.mrb[0].mxu0
      %778 = vmatprep.mubr.bf16.mxu0 0
      %779 = vmatmul.mubr.bf16.gmra.mrb[0].mxu0 %v479
      %v780 = vpop.f32.mrb[0].mxu0
      %v781 = vadd.f32 0.0, %v780
      %v782 = vpop.f32.mrb[0].mxu0
      %v783 = vpop.f32.mrb[0].mxu0
      %v784 = vadd.f32 0.0, %v783
      %v785 = vpop.f32.mrb[0].mxu0
      %786 = vmatprep.mubr.bf16.mxu0 0
      %787 = vmatmul.mubr.bf16.gmra.mrb[0].mxu0 %v480
      %v788 = vpop.f32.mrb[0].mxu0
      %v789 = vadd.f32 0.0, %v788
      %v790 = vpop.f32.mrb[0].mxu0
      %v791 = vpop.f32.mrb[0].mxu0
      %v792 = vadd.f32 0.0, %v791
      %v793 = vpop.f32.mrb[0].mxu0
      %794 = vdwg.mxu0
      %v795 = vxor.u32 %v572, 2147483648
      %v796 = vxor.u32 %v575, 2147483648
      %v797 = vxor.u32 %v580, 2147483648
      %v798 = vxor.u32 %v583, 2147483648
      %v799 = vxor.u32 %v588, 2147483648
      %v800 = vxor.u32 %v591, 2147483648
      %v801 = vxor.u32 %v596, 2147483648
      %v802 = vxor.u32 %v599, 2147483648
      %v803 = vxor.u32 %v604, 2147483648
      %v804 = vxor.u32 %v607, 2147483648
      %v805 = vxor.u32 %v612, 2147483648
      %v806 = vxor.u32 %v615, 2147483648
      %v807 = vxor.u32 %v620, 2147483648
      %v808 = vxor.u32 %v623, 2147483648
      %v809 = vxor.u32 %v628, 2147483648
      %v810 = vxor.u32 %v631, 2147483648
      %v811 = vmul.f32 %v795, 1.442695
      %v812 = vpow.pop %v811
      %v813 = vmul.f32 %v796, 1.442695
      %v814 = vpow.pop %v813
      %v815 = vmul.f32 %v797, 1.442695
      %v816 = vpow.pop %v815
      %v817 = vmul.f32 %v798, 1.442695
      %v818 = vpow.pop %v817
      %v819 = vmul.f32 %v799, 1.442695
      %v820 = vpow.pop %v819
      %v821 = vmul.f32 %v800, 1.442695
      %v822 = vpow.pop %v821
      %v823 = vmul.f32 %v801, 1.442695
      %v824 = vpow.pop %v823
      %v825 = vmul.f32 %v802, 1.442695
      %v826 = vpow.pop %v825
      %v827 = vmul.f32 %v803, 1.442695
      %v828 = vpow.pop %v827
      %v829 = vmul.f32 %v804, 1.442695
      %v830 = vpow.pop %v829
      %v831 = vmul.f32 %v805, 1.442695
      %v832 = vpow.pop %v831
      %v833 = vmul.f32 %v806, 1.442695
      %v834 = vpow.pop %v833
      %v835 = vmul.f32 %v807, 1.442695
      %v836 = vpow.pop %v835
      %v837 = vmul.f32 %v808, 1.442695
      %v838 = vpow.pop %v837
      %v839 = vmul.f32 %v809, 1.442695
      %v840 = vpow.pop %v839
      %v841 = vmul.f32 %v810, 1.442695
      %v842 = vpow.pop %v841
      %v843 = vadd.f32 %v812, 1.0
      %v844 = vadd.f32 %v814, 1.0
      %v845 = vadd.f32 %v816, 1.0
      %v846 = vadd.f32 %v818, 1.0
      %v847 = vadd.f32 %v820, 1.0
      %v848 = vadd.f32 %v822, 1.0
      %v849 = vadd.f32 %v824, 1.0
      %v850 = vadd.f32 %v826, 1.0
      %v851 = vadd.f32 %v828, 1.0
      %v852 = vadd.f32 %v830, 1.0
      %v853 = vadd.f32 %v832, 1.0
      %v854 = vadd.f32 %v834, 1.0
      %v855 = vadd.f32 %v836, 1.0
      %v856 = vadd.f32 %v838, 1.0
      %v857 = vadd.f32 %v840, 1.0
      %v858 = vadd.f32 %v842, 1.0
      %v859 = vrcp.pop %v843
      %v860 = vmul.f32 1.0, %v859
      %v861 = vrcp.pop %v844
      %v862 = vmul.f32 1.0, %v861
      %v863 = vrcp.pop %v845
      %v864 = vmul.f32 1.0, %v863
      %v865 = vrcp.pop %v846
      %v866 = vmul.f32 1.0, %v865
      %v867 = vrcp.pop %v847
      %v868 = vmul.f32 1.0, %v867
      %v869 = vrcp.pop %v848
      %v870 = vmul.f32 1.0, %v869
      %v871 = vrcp.pop %v849
      %v872 = vmul.f32 1.0, %v871
      %v873 = vrcp.pop %v850
      %v874 = vmul.f32 1.0, %v873
      %v875 = vrcp.pop %v851
      %v876 = vmul.f32 1.0, %v875
      %v877 = vrcp.pop %v852
      %v878 = vmul.f32 1.0, %v877
      %v879 = vrcp.pop %v853
      %v880 = vmul.f32 1.0, %v879
      %v881 = vrcp.pop %v854
      %v882 = vmul.f32 1.0, %v881
      %v883 = vrcp.pop %v855
      %v884 = vmul.f32 1.0, %v883
      %v885 = vrcp.pop %v856
      %v886 = vmul.f32 1.0, %v885
      %v887 = vrcp.pop %v857
      %v888 = vmul.f32 1.0, %v887
      %v889 = vrcp.pop %v858
      %v890 = vmul.f32 1.0, %v889
      %v891 = vmul.f32 %v572, %v860
      %v892 = vmul.f32 %v575, %v862
      %v893 = vmul.f32 %v580, %v864
      %v894 = vmul.f32 %v583, %v866
      %v895 = vmul.f32 %v588, %v868
      %v896 = vmul.f32 %v591, %v870
      %v897 = vmul.f32 %v596, %v872
      %v898 = vmul.f32 %v599, %v874
      %v899 = vmul.f32 %v604, %v876
      %v900 = vmul.f32 %v607, %v878
      %v901 = vmul.f32 %v612, %v880
      %v902 = vmul.f32 %v615, %v882
      %v903 = vmul.f32 %v620, %v884
      %v904 = vmul.f32 %v623, %v886
      %v905 = vmul.f32 %v628, %v888
      %v906 = vmul.f32 %v631, %v890
      %v907 = vmul.f32 %v891, %v733
      %v908 = vmul.f32 %v892, %v736
      %v909 = vmul.f32 %v893, %v741
      %v910 = vmul.f32 %v894, %v744
      %v911 = vmul.f32 %v895, %v749
      %v912 = vmul.f32 %v896, %v752
      %v913 = vmul.f32 %v897, %v757
      %v914 = vmul.f32 %v898, %v760
      %v915 = vmul.f32 %v899, %v765
      %v916 = vmul.f32 %v900, %v768
      %v917 = vmul.f32 %v901, %v773
      %v918 = vmul.f32 %v902, %v776
      %v919 = vmul.f32 %v903, %v781
      %v920 = vmul.f32 %v904, %v784
      %v921 = vmul.f32 %v905, %v789
      %v922 = vmul.f32 %v906, %v792
      %v923 = vld [vmem:[%s386] sm:$0xff]
      %v924 = vld [vmem:[%s386 + $0x8] sm:$0xff]
      %v925 = vld [vmem:[%s386 + $0x10] sm:$0xff]
      %v926 = vld [vmem:[%s386 + $0x18] sm:$0xff]
      %v927 = vld [vmem:[%s386 + $0x20] sm:$0xff]
      %v928 = vld [vmem:[%s386 + $0x28] sm:$0xff]
      %v929 = vld [vmem:[%s386 + $0x30] sm:$0xff]
      %v930 = vld [vmem:[%s386 + $0x38] sm:$0xff]
      %v931 = vld [vmem:[%s386 + $0x40] sm:$0xff]
      %v932 = vld [vmem:[%s386 + $0x48] sm:$0xff]
      %v933 = vld [vmem:[%s386 + $0x50] sm:$0xff]
      %v934 = vld [vmem:[%s386 + $0x58] sm:$0xff]
      %v935 = vld [vmem:[%s386 + $0x60] sm:$0xff]
      %v936 = vld [vmem:[%s386 + $0x68] sm:$0xff]
      %v937 = vld [vmem:[%s386 + $0x70] sm:$0xff]
      %v938 = vld [vmem:[%s386 + $0x78] sm:$0xff]
      %v939 = vpack.c.bf16 %v908, %v907
      %v940 = vpack.c.bf16 %v910, %v909
      %v941 = vpack.c.bf16 %v912, %v911
      %v942 = vpack.c.bf16 %v914, %v913
      %v943 = vpack.c.bf16 %v916, %v915
      %v944 = vpack.c.bf16 %v918, %v917
      %v945 = vpack.c.bf16 %v920, %v919
      %v946 = vpack.c.bf16 %v922, %v921
      %v947 = vld [vmem:[%s379] sm:$0xf]
      %v948 = vld [vmem:[%s379 + $0x4] sm:$0xf]
      %v949 = vld [vmem:[%s379 + $0x8] sm:$0xf]
      %v950 = vld [vmem:[%s379 + $0xc] sm:$0xf]
      %v951 = vld [vmem:[%s379 + $0x10] sm:$0xf]
      %v952 = vld [vmem:[%s379 + $0x14] sm:$0xf]
      %v953 = vld [vmem:[%s379 + $0x18] sm:$0xf]
      %v954 = vld [vmem:[%s379 + $0x1c] sm:$0xf]
      %v955 = vld [vmem:[%s379 + $0x20] sm:$0xf]
      %v956 = vld [vmem:[%s379 + $0x24] sm:$0xf]
      %v957 = vld [vmem:[%s379 + $0x28] sm:$0xf]
      %v958 = vld [vmem:[%s379 + $0x2c] sm:$0xf]
      %v959 = vld [vmem:[%s379 + $0x30] sm:$0xf]
      %v960 = vld [vmem:[%s379 + $0x34] sm:$0xf]
      %v961 = vld [vmem:[%s379 + $0x38] sm:$0xf]
      %v962 = vld [vmem:[%s379 + $0x3c] sm:$0xf]
      %v979 = vunpack.c.l.b16 %v947
      %v980 = vunpack.c.l.b16 %v948
      %v981 = vunpack.c.l.b16 %v949
      %v982 = vunpack.c.l.b16 %v950
      %v983 = vunpack.c.l.b16 %v951
      %v984 = vunpack.c.l.b16 %v952
      %v985 = vunpack.c.l.b16 %v953
      %v986 = vunpack.c.l.b16 %v954
      %v987 = vunpack.c.l.b16 %v955
      %v988 = vunpack.c.l.b16 %v956
      %v989 = vunpack.c.l.b16 %v957
      %v990 = vunpack.c.l.b16 %v958
      %v991 = vunpack.c.l.b16 %v959
      %v992 = vunpack.c.l.b16 %v960
      %v993 = vunpack.c.l.b16 %v961
      %v994 = vunpack.c.l.b16 %v962
      %v995 = vpack.c.b16 %v980, %v979
      %v996 = vpack.c.b16 %v982, %v981
      %v997 = vpack.c.b16 %v984, %v983
      %v998 = vpack.c.b16 %v986, %v985
      %v999 = vpack.c.b16 %v988, %v987
      %v1000 = vpack.c.b16 %v990, %v989
      %v1001 = vpack.c.b16 %v992, %v991
      %v1002 = vpack.c.b16 %v994, %v993
      %1011 = vmatprep.subr.bf16.mxu0 0
      %1012 = vmatpush1.bf16.msra.mxu0 %v995
      %1013 = vmatprep.subr.bf16.mxu0 0
      %1014 = vmatpush1.bf16.msra.mxu0 %v996
      %1015 = vmatprep.subr.bf16.mxu0 0
      %1016 = vmatpush1.bf16.msra.mxu0 %v997
      %1017 = vmatprep.subr.bf16.mxu0 0
      %1018 = vmatpush1.bf16.msra.mxu0 %v998
      %1019 = vmatprep.subr.bf16.mxu0 0
      %1020 = vmatpush1.bf16.msra.mxu0 %v999
      %1021 = vmatprep.subr.bf16.mxu0 0
      %1022 = vmatpush1.bf16.msra.mxu0 %v1000
      %1023 = vmatprep.subr.bf16.mxu0 0
      %1024 = vmatpush1.bf16.msra.mxu0 %v1001
      %1025 = vmatprep.subr.bf16.mxu0 0
      %1026 = vmatpush1.bf16.msra.mxu0 %v1002
      %1027 = vmatprep.subr.bf16.mxu0 0
      %1028 = vmatpush1.bf16.msra.mxu0 0
      %1029 = vmatprep.subr.bf16.mxu0 0
      %1030 = vmatpush1.bf16.msra.mxu0 0
      %1031 = vmatprep.subr.bf16.mxu0 0
      %1032 = vmatpush1.bf16.msra.mxu0 0
      %1033 = vmatprep.subr.bf16.mxu0 0
      %1034 = vmatpush1.bf16.msra.mxu0 0
      %1035 = vmatprep.subr.bf16.mxu0 0
      %1036 = vmatpush1.bf16.msra.mxu0 0
      %1037 = vmatprep.subr.bf16.mxu0 0
      %1038 = vmatpush1.bf16.msra.mxu0 0
      %1039 = vmatprep.subr.bf16.mxu0 0
      %1040 = vmatpush1.bf16.msra.mxu0 0
      %1041 = vmatprep.subr.bf16.mxu0 0
      %1042 = vmatpush1.bf16.msra.mxu0 0
      %1043 = vmatprep.mubr.bf16.mxu0 0
      %1044 = vmatmul.mubr.bf16.gmra.mrb[0].mxu0 %v939
      %v1045 = vpop.f32.mrb[0].mxu0
      %v1046 = vadd.f32 0.0, %v1045
      %v1047 = vpop.f32.mrb[0].mxu0
      %v1048 = vpop.f32.mrb[0].mxu0
      %v1049 = vadd.f32 0.0, %v1048
      %v1050 = vpop.f32.mrb[0].mxu0
      %1051 = vmatprep.mubr.bf16.mxu0 0
      %1052 = vmatmul.mubr.bf16.gmra.mrb[0].mxu0 %v940
      %v1053 = vpop.f32.mrb[0].mxu0
      %v1054 = vadd.f32 0.0, %v1053
      %v1055 = vpop.f32.mrb[0].mxu0
      %v1056 = vpop.f32.mrb[0].mxu0
      %v1057 = vadd.f32 0.0, %v1056
      %v1058 = vpop.f32.mrb[0].mxu0
      %1059 = vmatprep.mubr.bf16.mxu0 0
      %1060 = vmatmul.mubr.bf16.gmra.mrb[0].mxu0 %v941
      %v1061 = vpop.f32.mrb[0].mxu0
      %v1062 = vadd.f32 0.0, %v1061
      %v1063 = vpop.f32.mrb[0].mxu0
      %v1064 = vpop.f32.mrb[0].mxu0
      %v1065 = vadd.f32 0.0, %v1064
      %v1066 = vpop.f32.mrb[0].mxu0
      %1067 = vmatprep.mubr.bf16.mxu0 0
      %1068 = vmatmul.mubr.bf16.gmra.mrb[0].mxu0 %v942
      %v1069 = vpop.f32.mrb[0].mxu0
      %v1070 = vadd.f32 0.0, %v1069
      %v1071 = vpop.f32.mrb[0].mxu0
      %v1072 = vpop.f32.mrb[0].mxu0
      %v1073 = vadd.f32 0.0, %v1072
      %v1074 = vpop.f32.mrb[0].mxu0
      %1075 = vmatprep.mubr.bf16.mxu0 0
      %1076 = vmatmul.mubr.bf16.gmra.mrb[0].mxu0 %v943
      %v1077 = vpop.f32.mrb[0].mxu0
      %v1078 = vadd.f32 0.0, %v1077
      %v1079 = vpop.f32.mrb[0].mxu0
      %v1080 = vpop.f32.mrb[0].mxu0
      %v1081 = vadd.f32 0.0, %v1080
      %v1082 = vpop.f32.mrb[0].mxu0
      %1083 = vmatprep.mubr.bf16.mxu0 0
      %1084 = vmatmul.mubr.bf16.gmra.mrb[0].mxu0 %v944
      %v1085 = vpop.f32.mrb[0].mxu0
      %v1086 = vadd.f32 0.0, %v1085
      %v1087 = vpop.f32.mrb[0].mxu0
      %v1088 = vpop.f32.mrb[0].mxu0
      %v1089 = vadd.f32 0.0, %v1088
      %v1090 = vpop.f32.mrb[0].mxu0
      %1091 = vmatprep.mubr.bf16.mxu0 0
      %1092 = vmatmul.mubr.bf16.gmra.mrb[0].mxu0 %v945
      %v1093 = vpop.f32.mrb[0].mxu0
      %v1094 = vadd.f32 0.0, %v1093
      %v1095 = vpop.f32.mrb[0].mxu0
      %v1096 = vpop.f32.mrb[0].mxu0
      %v1097 = vadd.f32 0.0, %v1096
      %v1098 = vpop.f32.mrb[0].mxu0
      %1099 = vmatprep.mubr.bf16.mxu0 0
      %1100 = vmatmul.mubr.bf16.gmra.mrb[0].mxu0 %v946
      %v1101 = vpop.f32.mrb[0].mxu0
      %v1102 = vadd.f32 0.0, %v1101
      %v1103 = vpop.f32.mrb[0].mxu0
      %v1104 = vpop.f32.mrb[0].mxu0
      %v1105 = vadd.f32 0.0, %v1104
      %v1106 = vpop.f32.mrb[0].mxu0
      %1107 = vdwg.mxu0
      %v1108 = vadd.f32 %v923, %v1046
      %v1109 = vadd.f32 %v924, %v1049
      %v1110 = vadd.f32 %v925, %v1054
      %v1111 = vadd.f32 %v926, %v1057
      %v1112 = vadd.f32 %v927, %v1062
      %v1113 = vadd.f32 %v928, %v1065
      %v1114 = vadd.f32 %v929, %v1070
      %v1115 = vadd.f32 %v930, %v1073
      %v1116 = vadd.f32 %v931, %v1078
      %v1117 = vadd.f32 %v932, %v1081
      %v1118 = vadd.f32 %v933, %v1086
      %v1119 = vadd.f32 %v934, %v1089
      %v1120 = vadd.f32 %v935, %v1094
      %v1121 = vadd.f32 %v936, %v1097
      %v1122 = vadd.f32 %v937, %v1102
      %v1123 = vadd.f32 %v938, %v1105
      %1124 = vst [vmem:[%s386] sm:$0xff] %v1108
      %1125 = vst [vmem:[%s386 + $0x8] sm:$0xff] %v1109
      %1126 = vst [vmem:[%s386 + $0x10] sm:$0xff] %v1110
      %1127 = vst [vmem:[%s386 + $0x18] sm:$0xff] %v1111
      %1128 = vst [vmem:[%s386 + $0x20] sm:$0xff] %v1112
      %1129 = vst [vmem:[%s386 + $0x28] sm:$0xff] %v1113
      %1130 = vst [vmem:[%s386 + $0x30] sm:$0xff] %v1114
      %1131 = vst [vmem:[%s386 + $0x38] sm:$0xff] %v1115
      %1132 = vst [vmem:[%s386 + $0x40] sm:$0xff] %v1116
      %1133 = vst [vmem:[%s386 + $0x48] sm:$0xff] %v1117
      %1134 = vst [vmem:[%s386 + $0x50] sm:$0xff] %v1118
      %1135 = vst [vmem:[%s386 + $0x58] sm:$0xff] %v1119
      %1136 = vst [vmem:[%s386 + $0x60] sm:$0xff] %v1120
      %1137 = vst [vmem:[%s386 + $0x68] sm:$0xff] %v1121
      %1138 = vst [vmem:[%s386 + $0x70] sm:$0xff] %v1122
      %1139 = vst [vmem:[%s386 + $0x78] sm:$0xff] %v1123
      // Predicated region
      $region45: #{moe_forward.1} parent=39 // pred_check
        %p1140 = pneg %p389
      $region46: #{moe_forward.1} parent=39 // pred_check_branch
        %1142 = sbr.rel (%p1140) target = $region48
      $region47: #{moe_forward.1} parent=39 // pred_region
        %v1143 = vld [vmem:[%s386] sm:$0xff]
        %v1144 = vld [vmem:[%s386 + $0x8] sm:$0xff]
        %v1145 = vld [vmem:[%s386 + $0x10] sm:$0xff]
        %v1146 = vld [vmem:[%s386 + $0x18] sm:$0xff]
        %v1147 = vld [vmem:[%s386 + $0x20] sm:$0xff]
        %v1148 = vld [vmem:[%s386 + $0x28] sm:$0xff]
        %v1149 = vld [vmem:[%s386 + $0x30] sm:$0xff]
        %v1150 = vld [vmem:[%s386 + $0x38] sm:$0xff]
        %v1151 = vld [vmem:[%s386 + $0x40] sm:$0xff]
        %v1152 = vld [vmem:[%s386 + $0x48] sm:$0xff]
        %v1153 = vld [vmem:[%s386 + $0x50] sm:$0xff]
        %v1154 = vld [vmem:[%s386 + $0x58] sm:$0xff]
        %v1155 = vld [vmem:[%s386 + $0x60] sm:$0xff]
        %v1156 = vld [vmem:[%s386 + $0x68] sm:$0xff]
        %v1157 = vld [vmem:[%s386 + $0x70] sm:$0xff]
        %v1158 = vld [vmem:[%s386 + $0x78] sm:$0xff]
        %v1159 = vld [vmem:[%s348] sm:$0xff]
        %v1160 = vld [vmem:[%s348 + $0x8] sm:$0xff]
        %v1161 = vld [vmem:[%s348 + $0x10] sm:$0xff]
        %v1162 = vld [vmem:[%s348 + $0x18] sm:$0xff]
        %v1163 = vld [vmem:[%s348 + $0x20] sm:$0xff]
        %v1164 = vld [vmem:[%s348 + $0x28] sm:$0xff]
        %v1165 = vld [vmem:[%s348 + $0x30] sm:$0xff]
        %v1166 = vld [vmem:[%s348 + $0x38] sm:$0xff]
        %v1167 = vld [vmem:[%s348 + $0x40] sm:$0xff]
        %v1168 = vld [vmem:[%s348 + $0x48] sm:$0xff]
        %v1169 = vld [vmem:[%s348 + $0x50] sm:$0xff]
        %v1170 = vld [vmem:[%s348 + $0x58] sm:$0xff]
        %v1171 = vld [vmem:[%s348 + $0x60] sm:$0xff]
        %v1172 = vld [vmem:[%s348 + $0x68] sm:$0xff]
        %v1173 = vld [vmem:[%s348 + $0x70] sm:$0xff]
        %v1174 = vld [vmem:[%s348 + $0x78] sm:$0xff]
        %1176 = vset.pattern.permute.xlu0 0
        %1177 = vperm.xlu0 %1176, %v1159
        %v1178 = vpop.permute.xlu0 %1177
        %1181 = vset.pattern.permute.xlu0 0
        %1182 = vperm.xlu0 %1181, %v1160
        %v1183 = vpop.permute.xlu0 %1182
        %1186 = vset.pattern.permute.xlu0 0
        %1187 = vperm.xlu0 %1186, %v1161
        %v1188 = vpop.permute.xlu0 %1187
        %1191 = vset.pattern.permute.xlu0 0
        %1192 = vperm.xlu0 %1191, %v1162
        %v1193 = vpop.permute.xlu0 %1192
        %1196 = vset.pattern.permute.xlu0 0
        %1197 = vperm.xlu0 %1196, %v1163
        %v1198 = vpop.permute.xlu0 %1197
        %1201 = vset.pattern.permute.xlu0 0
        %1202 = vperm.xlu0 %1201, %v1164
        %v1203 = vpop.permute.xlu0 %1202
        %1206 = vset.pattern.permute.xlu0 0
        %1207 = vperm.xlu0 %1206, %v1165
        %v1208 = vpop.permute.xlu0 %1207
        %1211 = vset.pattern.permute.xlu0 0
        %1212 = vperm.xlu0 %1211, %v1166
        %v1213 = vpop.permute.xlu0 %1212
        %1216 = vset.pattern.permute.xlu0 0
        %1217 = vperm.xlu0 %1216, %v1167
        %v1218 = vpop.permute.xlu0 %1217
        %1221 = vset.pattern.permute.xlu0 0
        %1222 = vperm.xlu0 %1221, %v1168
        %v1223 = vpop.permute.xlu0 %1222
        %1226 = vset.pattern.permute.xlu0 0
        %1227 = vperm.xlu0 %1226, %v1169
        %v1228 = vpop.permute.xlu0 %1227
        %1231 = vset.pattern.permute.xlu0 0
        %1232 = vperm.xlu0 %1231, %v1170
        %v1233 = vpop.permute.xlu0 %1232
        %1236 = vset.pattern.permute.xlu0 0
        %1237 = vperm.xlu0 %1236, %v1171
        %v1238 = vpop.permute.xlu0 %1237
        %1241 = vset.pattern.permute.xlu0 0
        %1242 = vperm.xlu0 %1241, %v1172
        %v1243 = vpop.permute.xlu0 %1242
        %1246 = vset.pattern.permute.xlu0 0
        %1247 = vperm.xlu0 %1246, %v1173
        %v1248 = vpop.permute.xlu0 %1247
        %1251 = vset.pattern.permute.xlu0 0
        %1252 = vperm.xlu0 %1251, %v1174
        %v1253 = vpop.permute.xlu0 %1252
        %v1255 = vmul.f32 %v1143, %v1178
        %v1256 = vmul.f32 %v1144, %v1183
        %v1257 = vmul.f32 %v1145, %v1188
        %v1258 = vmul.f32 %v1146, %v1193
        %v1259 = vmul.f32 %v1147, %v1198
        %v1260 = vmul.f32 %v1148, %v1203
        %v1261 = vmul.f32 %v1149, %v1208
        %v1262 = vmul.f32 %v1150, %v1213
        %v1263 = vmul.f32 %v1151, %v1218
        %v1264 = vmul.f32 %v1152, %v1223
        %v1265 = vmul.f32 %v1153, %v1228
        %v1266 = vmul.f32 %v1154, %v1233
        %v1267 = vmul.f32 %v1155, %v1238
        %v1268 = vmul.f32 %v1156, %v1243
        %v1269 = vmul.f32 %v1157, %v1248
        %v1270 = vmul.f32 %v1158, %v1253
        %1271 = vst [vmem:[%s386] sm:$0xff] %v1255
        %1272 = vst [vmem:[%s386 + $0x8] sm:$0xff] %v1256
        %1273 = vst [vmem:[%s386 + $0x10] sm:$0xff] %v1257
        %1274 = vst [vmem:[%s386 + $0x18] sm:$0xff] %v1258
        %1275 = vst [vmem:[%s386 + $0x20] sm:$0xff] %v1259
        %1276 = vst [vmem:[%s386 + $0x28] sm:$0xff] %v1260
        %1277 = vst [vmem:[%s386 + $0x30] sm:$0xff] %v1261
        %1278 = vst [vmem:[%s386 + $0x38] sm:$0xff] %v1262
        %1279 = vst [vmem:[%s386 + $0x40] sm:$0xff] %v1263
        %1280 = vst [vmem:[%s386 + $0x48] sm:$0xff] %v1264
        %1281 = vst [vmem:[%s386 + $0x50] sm:$0xff] %v1265
        %1282 = vst [vmem:[%s386 + $0x58] sm:$0xff] %v1266
        %1283 = vst [vmem:[%s386 + $0x60] sm:$0xff] %v1267
        %1284 = vst [vmem:[%s386 + $0x68] sm:$0xff] %v1268
        %1285 = vst [vmem:[%s386 + $0x70] sm:$0xff] %v1269
        %1286 = vst [vmem:[%s386 + $0x78] sm:$0xff] %v1270
      $region48: #{moe_forward.1} parent=39 // pred_fallthru
        _
      %s1287 = smul.u32 16, %s27
      %p1288 = scmp.lt.s32.totalorder %s1287, 79
      %s1289 = scalar_select %p1288, %s1287, 79
      %s1290 = smul.addr %s1289, 8
      %s1291 = scalar_lea.vmem %s6, %s1290
      // Predicated region
      $region49: #{moe_forward.1} parent=39 // pred_check
        %p1292 = pneg %p195
      $region50: #{moe_forward.1} parent=39 // pred_check_branch
        %1294 = sbr.rel (%p1292) target = $region52
      $region51: #{moe_forward.1} parent=39 // pred_region
        %s1295 = smul.u32 16, %s27
      $region52: #{moe_forward.1} parent=39 // pred_fallthru
        _
    $region40: #{moe_forward.1} parent=5 // pred_fallthru
      _
    %p1296 = scmp.le.s32.totalorder 2, %s18
    // Predicated region
    $region53: #{moe_forward.1} parent=5 // pred_check
      %p1297 = pneg %p1296
    $region54: #{moe_forward.1} parent=5 // pred_check_branch
      %1299 = sbr.rel (%p1297) target = $region56
    $region55: #{moe_forward.1} parent=5 // pred_region
      %s1300 = ssub.s32 %s18, 2
      // Predicated region
      $region57: #{moe_forward.1} parent=55 // pred_check
        %p1301 = pneg %p201
      $region58: #{moe_forward.1} parent=55 // pred_check_branch
        %1303 = sbr.rel (%p1301) target = $region60
      $region59: #{moe_forward.1} parent=55 // pred_region
        %s1304 = smul.u32 16, %s29
        %p1305 = scmp.lt.s32.totalorder %s1304, 79
        %s1306 = scalar_select %p1305, %s1304, 79
        %s1307 = smul.addr %s1306, 8
        %s1308 = scalar_lea.vmem %s6, %s1307
      $region60: #{moe_forward.1} parent=55 // pred_fallthru
        _
    $region56: #{moe_forward.1} parent=5 // pred_fallthru
      _
  $region6: #{moe_forward.1} parent=0 // loop_footer
    %s22 = sadd.s32 1, %s18
  $region7: #{moe_forward.1} parent=0 // loop_footer_branch
    %17 = sbr.rel target = $region3
  $region8: #{moe_forward.1} parent=0 // loop_exit
    _

</llo_original>
